<compile_context>
chip_gen: v7x
topology: tpu7x:2x2x1
jax: 0.10.0
libtpu: 0.0.40
codegen_flags: <defaults>
</compile_context>

<pallas_src>
import functools

import jax
import jax.numpy as jnp
import numpy as np
from jax.experimental import pallas as pl
from jax.experimental.pallas import tpu as pltpu


def _round_up(x, m):
    return (x + m - 1) // m * m


def _pgm_loss_kernel(vals_ref, w0_ref, d_ref, c0_ref, c1_ref, c2_ref, c3_ref,
                     out_ref, *, nup, nbp):
    # vals_ref: (P, TB) with P = nup + 2*nbp, batch on the lane axis.
    #   rows [0, nup)            -> gathered univariate variable values (tu)
    #   rows [nup, nup+nbp)      -> gathered bivariate var-1 values (ta)
    #   rows [nup+nbp, nup+2nbp) -> gathered bivariate var-2 values (tb)
    # weight refs: (nup, 1) / (nbp, 1) columns, broadcast across the batch lanes.
    tu = vals_ref[0:nup, :]
    ta = vals_ref[nup:nup + nbp, :]
    tb = vals_ref[nup + nbp:nup + 2 * nbp, :]

    uni = w0_ref[...] + tu * d_ref[...]                       # (nup, TB)
    biv = (c0_ref[...] + ta * c1_ref[...] + tb * c2_ref[...]
           + (ta * tb) * c3_ref[...])                         # (nbp, TB)

    # Sublane reductions -> naturally lane-dense (1, TB) output store.
    out_ref[...] = (jnp.sum(uni, axis=0, keepdims=True)
                    + jnp.sum(biv, axis=0, keepdims=True))


def pgm_loss(X, y, uni_vars, uni_w0, uni_w1,
             biv_v1, biv_v2, biv_w00, biv_w01, biv_w10, biv_w11,
             *, batch_tile=512):
    """Equivalent of PGMLoss.forward(X, y) -> loss_val of shape (B,)."""
    X = X.astype(jnp.float32)
    y = y.astype(jnp.float32)
    total = jnp.concatenate([X, y], axis=1)                   # (B, D)
    B = total.shape[0]

    Nu = int(uni_vars.shape[0])
    Nb = int(biv_v1.shape[0])
    # Feature counts live on the sublane axis -> pad to multiples of 8.
    NUP = _round_up(Nu, 8)
    NBP = _round_up(Nb, 8)
    P = NUP + 2 * NBP

    # Batch is the lane axis -> tile must be a multiple of 128 (or full).
    TB = _round_up(min(batch_tile, _round_up(B, 128)), 128)
    B_pad = _round_up(B, TB)

    def pad_idx(idx, n):
        # Pad with index 0; the matching weights are zero-padded so the padded
        # rows contribute exactly 0 to the sums.
        return jnp.pad(idx.astype(jnp.int32), (0, n - idx.shape[0]))

    def pad_w(w, n):
        return jnp.pad(w.astype(jnp.float32), (0, n - w.shape[0])).reshape(n, 1)

    uvp = pad_idx(uni_vars, NUP)
    v1p = pad_idx(biv_v1, NBP)
    v2p = pad_idx(biv_v2, NBP)

    # One packed, transposed, batch-padded values array: (P, B_pad).
    vals = jnp.concatenate(
        [total[:, uvp], total[:, v1p], total[:, v2p]], axis=1)  # (B, P)
    vals_t = jnp.pad(vals.T, ((0, 0), (0, B_pad - B)))           # (P, B_pad)

    # Algebraically reduced weight columns (zero-padded -> exact sums).
    w0 = pad_w(uni_w0, NUP)
    d = pad_w(uni_w1 - uni_w0, NUP)
    c0 = pad_w(biv_w00, NBP)
    c1 = pad_w(biv_w10 - biv_w00, NBP)
    c2 = pad_w(biv_w01 - biv_w00, NBP)
    c3 = pad_w(biv_w11 - biv_w01 - biv_w10 + biv_w00, NBP)

    kernel = functools.partial(_pgm_loss_kernel, nup=NUP, nbp=NBP)
    grid = (B_pad // TB,)

    out = pl.pallas_call(
        kernel,
        out_shape=jax.ShapeDtypeStruct((1, B_pad), jnp.float32),
        grid=grid,
        in_specs=[
            # Packed values, tiled over the batch (lane) axis.
            pl.BlockSpec((P, TB), lambda i: (0, i)),
            # Weight columns: constant block index -> DMA'd once, kept resident.
            pl.BlockSpec((NUP, 1), lambda i: (0, 0)),
            pl.BlockSpec((NUP, 1), lambda i: (0, 0)),
            pl.BlockSpec((NBP, 1), lambda i: (0, 0)),
            pl.BlockSpec((NBP, 1), lambda i: (0, 0)),
            pl.BlockSpec((NBP, 1), lambda i: (0, 0)),
            pl.BlockSpec((NBP, 1), lambda i: (0, 0)),
        ],
        out_specs=pl.BlockSpec((1, TB), lambda i: (0, i)),
        compiler_params=pltpu.CompilerParams(
            dimension_semantics=("parallel",),
            vmem_limit_bytes=32 * 1024 * 1024,
        ),
    )(vals_t, w0, d, c0, c1, c2, c3)

    return out[0, :B]                                          # (B,)


def _reference(X, y, uni_vars, uni_w0, uni_w1,
               biv_v1, biv_v2, biv_w00, biv_w01, biv_w10, biv_w11):
    total = jnp.concatenate([X, y], axis=1)
    tu = total[:, uni_vars]
    uni = (1.0 - tu) * uni_w0 + tu * uni_w1
    ta = total[:, biv_v1]
    tb = total[:, biv_v2]
    biv = ((1.0 - ta) * (1.0 - tb) * biv_w00[None, :]
           + (1.0 - ta) * tb * biv_w01[None, :]
           + ta * (1.0 - tb) * biv_w10[None, :]
           + ta * tb * biv_w11[None, :])
    return jnp.sum(uni, axis=1) + jnp.sum(biv, axis=1)


if __name__ == "__main__":
    key = jax.random.PRNGKey(0)
    kx, ky, k0, k1, k2, k3, k4, k5 = jax.random.split(key, 8)

    # Small shapes consistent with the forward: X (B, Dx), y (B, Dy),
    # total (B, Dx+Dy); Nu univariate functions, Nb bivariate functions.
    B, Dx, Dy = 8, 16, 4
    D = Dx + Dy
    Nu, Nb = 8, 8

    X = jax.random.uniform(kx, (B, Dx), dtype=jnp.float32)
    y = jax.random.uniform(ky, (B, Dy), dtype=jnp.float32)

    # Deterministic synthetic "univariate_functions" / "bivariate_functions"
    # parameters (no checkpoint loading).
    uni_vars = jnp.array(np.arange(Nu) % D, dtype=jnp.int32)
    uni_w0 = jax.random.normal(k0, (Nu,), dtype=jnp.float32)
    uni_w1 = jax.random.normal(k1, (Nu,), dtype=jnp.float32)

    biv_v1 = jnp.array((np.arange(Nb) * 3) % D, dtype=jnp.int32)
    biv_v2 = jnp.array((np.arange(Nb) * 5 + 1) % D, dtype=jnp.int32)
    biv_w00 = jax.random.normal(k2, (Nb,), dtype=jnp.float32)
    biv_w01 = jax.random.normal(k3, (Nb,), dtype=jnp.float32)
    biv_w10 = jax.random.normal(k4, (Nb,), dtype=jnp.float32)
    biv_w11 = jax.random.normal(k5, (Nb,), dtype=jnp.float32)

    loss = pgm_loss(X, y, uni_vars, uni_w0, uni_w1,
                    biv_v1, biv_v2, biv_w00, biv_w01, biv_w10, biv_w11)
    loss = jax.block_until_ready(loss)

    ref = _reference(X, y, uni_vars, uni_w0, uni_w1,
                     biv_v1, biv_v2, biv_w00, biv_w01, biv_w10, biv_w11)
    np.testing.assert_allclose(np.asarray(loss), np.asarray(ref),
                               rtol=1e-5, atol=1e-5)

    print("KERNEL_OK")
</pallas_src>

<mosaic_0001>
module attributes {stable_mosaic.version = 11 : i64} {
  func.func @_pgm_loss_kernel(%arg0: i32, %arg1: memref<24x128xf32, #tpu.memory_space<vmem>>, %arg2: memref<8x1xf32, #tpu.memory_space<vmem>>, %arg3: memref<8x1xf32, #tpu.memory_space<vmem>>, %arg4: memref<8x1xf32, #tpu.memory_space<vmem>>, %arg5: memref<8x1xf32, #tpu.memory_space<vmem>>, %arg6: memref<8x1xf32, #tpu.memory_space<vmem>>, %arg7: memref<8x1xf32, #tpu.memory_space<vmem>>, %arg8: memref<1x128xf32, #tpu.memory_space<vmem>>) attributes {dimension_semantics = [#tpu.dimension_semantics<parallel>], iteration_bounds = array<i64: 1>, scalar_prefetch = 0 : i64, scratch_operands = 0 : i64, tpu.core_type = #tpu.core_type<tc>, window_params = [{transform_indices = @transform_0, window_bounds = array<i64: 24, 128>}, {pipeline_mode = #tpu.pipeline_mode<synchronous>, transform_indices = @transform_1, window_bounds = array<i64: 8, 1>}, {pipeline_mode = #tpu.pipeline_mode<synchronous>, transform_indices = @transform_2, window_bounds = array<i64: 8, 1>}, {pipeline_mode = #tpu.pipeline_mode<synchronous>, transform_indices = @transform_3, window_bounds = array<i64: 8, 1>}, {pipeline_mode = #tpu.pipeline_mode<synchronous>, transform_indices = @transform_4, window_bounds = array<i64: 8, 1>}, {pipeline_mode = #tpu.pipeline_mode<synchronous>, transform_indices = @transform_5, window_bounds = array<i64: 8, 1>}, {pipeline_mode = #tpu.pipeline_mode<synchronous>, transform_indices = @transform_6, window_bounds = array<i64: 8, 1>}, {transform_indices = @transform_7, window_bounds = array<i64: 1, 128>}]} {
    %c0 = arith.constant 0 : index
    %c0_0 = arith.constant 0 : index
    %0 = vector.load %arg1[%c0, %c0_0] : memref<24x128xf32, #tpu.memory_space<vmem>>, vector<8x128xf32>
    %c8 = arith.constant 8 : index
    %c0_1 = arith.constant 0 : index
    %1 = vector.load %arg1[%c8, %c0_1] : memref<24x128xf32, #tpu.memory_space<vmem>>, vector<8x128xf32>
    %c16 = arith.constant 16 : index
    %c0_2 = arith.constant 0 : index
    %2 = vector.load %arg1[%c16, %c0_2] : memref<24x128xf32, #tpu.memory_space<vmem>>, vector<8x128xf32>
    %c0_3 = arith.constant 0 : index
    %c0_4 = arith.constant 0 : index
    %3 = vector.load %arg2[%c0_3, %c0_4] : memref<8x1xf32, #tpu.memory_space<vmem>>, vector<8x1xf32>
    %c0_5 = arith.constant 0 : index
    %c0_6 = arith.constant 0 : index
    %4 = vector.load %arg3[%c0_5, %c0_6] : memref<8x1xf32, #tpu.memory_space<vmem>>, vector<8x1xf32>
    %5 = vector.broadcast %4 : vector<8x1xf32> to vector<8x128xf32>
    %6 = arith.mulf %0, %5 : vector<8x128xf32>
    %7 = vector.broadcast %3 : vector<8x1xf32> to vector<8x128xf32>
    %8 = arith.addf %7, %6 : vector<8x128xf32>
    %c0_7 = arith.constant 0 : index
    %c0_8 = arith.constant 0 : index
    %9 = vector.load %arg4[%c0_7, %c0_8] : memref<8x1xf32, #tpu.memory_space<vmem>>, vector<8x1xf32>
    %c0_9 = arith.constant 0 : index
    %c0_10 = arith.constant 0 : index
    %10 = vector.load %arg5[%c0_9, %c0_10] : memref<8x1xf32, #tpu.memory_space<vmem>>, vector<8x1xf32>
    %11 = vector.broadcast %10 : vector<8x1xf32> to vector<8x128xf32>
    %12 = arith.mulf %1, %11 : vector<8x128xf32>
    %13 = vector.broadcast %9 : vector<8x1xf32> to vector<8x128xf32>
    %14 = arith.addf %13, %12 : vector<8x128xf32>
    %c0_11 = arith.constant 0 : index
    %c0_12 = arith.constant 0 : index
    %15 = vector.load %arg6[%c0_11, %c0_12] : memref<8x1xf32, #tpu.memory_space<vmem>>, vector<8x1xf32>
    %16 = vector.broadcast %15 : vector<8x1xf32> to vector<8x128xf32>
    %17 = arith.mulf %2, %16 : vector<8x128xf32>
    %18 = arith.addf %14, %17 : vector<8x128xf32>
    %19 = arith.mulf %1, %2 : vector<8x128xf32>
    %c0_13 = arith.constant 0 : index
    %c0_14 = arith.constant 0 : index
    %20 = vector.load %arg7[%c0_13, %c0_14] : memref<8x1xf32, #tpu.memory_space<vmem>>, vector<8x1xf32>
    %21 = vector.broadcast %20 : vector<8x1xf32> to vector<8x128xf32>
    %22 = arith.mulf %19, %21 : vector<8x128xf32>
    %23 = arith.addf %18, %22 : vector<8x128xf32>
    %cst = arith.constant dense<0.000000e+00> : vector<128xf32>
    %24 = vector.multi_reduction <add>, %8, %cst [0] : vector<8x128xf32> to vector<128xf32>
    %25 = vector.shape_cast %24 : vector<128xf32> to vector<1x128xf32>
    %cst_15 = arith.constant dense<0.000000e+00> : vector<128xf32>
    %26 = vector.multi_reduction <add>, %23, %cst_15 [0] : vector<8x128xf32> to vector<128xf32>
    %27 = vector.shape_cast %26 : vector<128xf32> to vector<1x128xf32>
    %28 = arith.addf %25, %27 : vector<1x128xf32>
    %c0_16 = arith.constant 0 : index
    %c0_17 = arith.constant 0 : index
    %29 = vector.load %arg8[%c0_16, %c0_17] : memref<1x128xf32, #tpu.memory_space<vmem>>, vector<1x128xf32>
    tpu.vector_store %arg8[%c0_16, %c0_17], %28 {strides = array<i32>} : memref<1x128xf32, #tpu.memory_space<vmem>>, vector<1x128xf32>,
    return
  }
  func.func @transform_0(%arg0: i32) -> (i32, i32) {
    %c0_i32 = arith.constant 0 : i32
    %c0_i32_0 = arith.constant 0 : i32
    return %c0_i32, %arg0 : i32, i32
  }
  func.func @transform_1(%arg0: i32) -> (i32, i32) {
    %c0_i32 = arith.constant 0 : i32
    %c0_i32_0 = arith.constant 0 : i32
    %c0_i32_1 = arith.constant 0 : i32
    return %c0_i32, %c0_i32_0 : i32, i32
  }
  func.func @transform_2(%arg0: i32) -> (i32, i32) {
    %c0_i32 = arith.constant 0 : i32
    %c0_i32_0 = arith.constant 0 : i32
    %c0_i32_1 = arith.constant 0 : i32
    return %c0_i32, %c0_i32_0 : i32, i32
  }
  func.func @transform_3(%arg0: i32) -> (i32, i32) {
    %c0_i32 = arith.constant 0 : i32
    %c0_i32_0 = arith.constant 0 : i32
    %c0_i32_1 = arith.constant 0 : i32
    return %c0_i32, %c0_i32_0 : i32, i32
  }
  func.func @transform_4(%arg0: i32) -> (i32, i32) {
    %c0_i32 = arith.constant 0 : i32
    %c0_i32_0 = arith.constant 0 : i32
    %c0_i32_1 = arith.constant 0 : i32
    return %c0_i32, %c0_i32_0 : i32, i32
  }
  func.func @transform_5(%arg0: i32) -> (i32, i32) {
    %c0_i32 = arith.constant 0 : i32
    %c0_i32_0 = arith.constant 0 : i32
    %c0_i32_1 = arith.constant 0 : i32
    return %c0_i32, %c0_i32_0 : i32, i32
  }
  func.func @transform_6(%arg0: i32) -> (i32, i32) {
    %c0_i32 = arith.constant 0 : i32
    %c0_i32_0 = arith.constant 0 : i32
    %c0_i32_1 = arith.constant 0 : i32
    return %c0_i32, %c0_i32_0 : i32, i32
  }
  func.func @transform_7(%arg0: i32) -> (i32, i32) {
    %c0_i32 = arith.constant 0 : i32
    %c0_i32_0 = arith.constant 0 : i32
    return %c0_i32, %arg0 : i32, i32
  }
}

</mosaic_0001>

<llo_original>
// kernel: tpu_custom_call.1
$region0: #{tpu_custom_call.1}
  #allocation0 [shape = 'u32[]', space=smem, size = 0x4, offset = 0x4, fixed_abs, tag = 'smem constant byte address 0x4 - core index']
  #allocation1 [shape = 'u32[144,128]{1,0:T(1,128)}', space=vmem, size = 0x12000, scoped, tag = 'internal scratch']
  %s0 = inlined_call_operand.vmem [shape: f32[24,128], index: 0, kind: input, shape index: {}]
  %s1 = inlined_call_operand.vmem [shape: f32[8,1], index: 1, kind: input, shape index: {}]
  %s2 = inlined_call_operand.vmem [shape: f32[8,1], index: 2, kind: input, shape index: {}]
  %s3 = inlined_call_operand.vmem [shape: f32[8,1], index: 3, kind: input, shape index: {}]
  %s4 = inlined_call_operand.vmem [shape: f32[8,1], index: 4, kind: input, shape index: {}]
  %s5 = inlined_call_operand.vmem [shape: f32[8,1], index: 5, kind: input, shape index: {}]
  %s6 = inlined_call_operand.vmem [shape: f32[8,1], index: 6, kind: input, shape index: {}]
  %s7 = inlined_call_operand.hbm [shape: f32[1,128], index: 7, kind: output, shape index: {}]
  %s8 = sld [smem:[#allocation0]]
  $region38: #{tpu_custom_call.1} parent=0
    _
  %s10 = ssub.s32 1, %s8
  %s11 = scalar_select 0, %s10, %s8
  $region1: #{tpu_custom_call.1} parent=0
    #allocation2 [shape = 'u8[512]{0}', space=vmem, size = 0x400, scoped, tag = 'output window, operand 0, single buffered']
    #allocation3 [shape = 's32[1]{0}', space=sflag, size = 0x4, scoped, tag = 'scoped memory for tpu_custom_call.1']
    %12 = vsyncpa [#allocation3], 0
    // Predicated region
    $region2: #{tpu_custom_call.1} parent=1 // pred_check
      _
    $region3: #{tpu_custom_call.1} parent=1 // pred_check_branch
      %14 = sbr.rel (0) target = $region5
    $region4: #{tpu_custom_call.1} parent=1 // pred_region
      _
    $region5: #{tpu_custom_call.1} parent=1 // pred_fallthru
      _
    // Predicated region
    $region6: #{tpu_custom_call.1} parent=1 // pred_check
      _
    $region7: #{tpu_custom_call.1} parent=1 // pred_check_branch
      %16 = sbr.rel (0) target = $region9
    $region8: #{tpu_custom_call.1} parent=1 // pred_region
      _
    $region9: #{tpu_custom_call.1} parent=1 // pred_fallthru
      _
    // Predicated region
    $region10: #{tpu_custom_call.1} parent=1 // pred_check
      _
    $region11: #{tpu_custom_call.1} parent=1 // pred_check_branch
      %18 = sbr.rel (0) target = $region13
    $region12: #{tpu_custom_call.1} parent=1 // pred_region
      _
    $region13: #{tpu_custom_call.1} parent=1 // pred_fallthru
      _
    // Predicated region
    $region14: #{tpu_custom_call.1} parent=1 // pred_check
      _
    $region15: #{tpu_custom_call.1} parent=1 // pred_check_branch
      %20 = sbr.rel (0) target = $region17
    $region16: #{tpu_custom_call.1} parent=1 // pred_region
      _
    $region17: #{tpu_custom_call.1} parent=1 // pred_fallthru
      _
    // Predicated region
    $region18: #{tpu_custom_call.1} parent=1 // pred_check
      _
    $region19: #{tpu_custom_call.1} parent=1 // pred_check_branch
      %22 = sbr.rel (0) target = $region21
    $region20: #{tpu_custom_call.1} parent=1 // pred_region
      _
    $region21: #{tpu_custom_call.1} parent=1 // pred_fallthru
      _
    // Predicated region
    $region22: #{tpu_custom_call.1} parent=1 // pred_check
      _
    $region23: #{tpu_custom_call.1} parent=1 // pred_check_branch
      %24 = sbr.rel (0) target = $region25
    $region24: #{tpu_custom_call.1} parent=1 // pred_region
      _
    $region25: #{tpu_custom_call.1} parent=1 // pred_fallthru
      _
    // Predicated region
    $region26: #{tpu_custom_call.1} parent=1 // pred_check
      _
    $region27: #{tpu_custom_call.1} parent=1 // pred_check_branch
      %26 = sbr.rel (0) target = $region29
    $region28: #{tpu_custom_call.1} parent=1 // pred_region
      _
    $region29: #{tpu_custom_call.1} parent=1 // pred_fallthru
      _
    %v27 = vld [vmem:[%s0] sm:$0xff]
    %v28 = vld [vmem:[%s0 + $0x8] sm:$0xff]
    %v29 = vld [vmem:[%s0 + $0x10] sm:$0xff]
    %v30 = vld [vmem:[%s1] sm:$0xff]
    %v31 = vld [vmem:[%s2] sm:$0xff]
    %33 = vset.pattern.permute.xlu0 0
    %34 = vperm.xlu0 %33, %v31
    %v35 = vpop.permute.xlu0 %34
    %v37 = vmul.f32 %v27, %v35
    %39 = vset.pattern.permute.xlu0 0
    %40 = vperm.xlu0 %39, %v30
    %v41 = vpop.permute.xlu0 %40
    %v43 = vadd.f32 %v41, %v37
    %v44 = vld [vmem:[%s3] sm:$0xff]
    %v45 = vld [vmem:[%s4] sm:$0xff]
    %47 = vset.pattern.permute.xlu0 0
    %48 = vperm.xlu0 %47, %v45
    %v49 = vpop.permute.xlu0 %48
    %v51 = vmul.f32 %v28, %v49
    %53 = vset.pattern.permute.xlu0 0
    %54 = vperm.xlu0 %53, %v44
    %v55 = vpop.permute.xlu0 %54
    %v57 = vadd.f32 %v55, %v51
    %v58 = vld [vmem:[%s5] sm:$0xff]
    %60 = vset.pattern.permute.xlu0 0
    %61 = vperm.xlu0 %60, %v58
    %v62 = vpop.permute.xlu0 %61
    %v64 = vmul.f32 %v29, %v62
    %v65 = vadd.f32 %v57, %v64
    %v66 = vmul.f32 %v28, %v29
    %v67 = vld [vmem:[%s6] sm:$0xff]
    %69 = vset.pattern.permute.xlu0 0
    %70 = vperm.xlu0 %69, %v67
    %v71 = vpop.permute.xlu0 %70
    %v73 = vmul.f32 %v66, %v71
    %v74 = vadd.f32 %v65, %v73
    %v75 = vrot.slane %v43, 4
    %v76 = vadd.f32 %v43, %v75
    %v77 = vrot.slane %v76, 2
    %v78 = vadd.f32 %v76, %v77
    %v79 = vrot.slane %v78, 1
    %v80 = vadd.f32 %v78, %v79
    %v81 = vrot.slane %v74, 4
    %v82 = vadd.f32 %v74, %v81
    %v83 = vrot.slane %v82, 2
    %v84 = vadd.f32 %v82, %v83
    %v85 = vrot.slane %v84, 1
    %v86 = vadd.f32 %v84, %v85
    %v87 = vadd.f32 %v80, %v86
    %88 = vst [vmem:[#allocation2] sm:$0x1] %v87
    // Predicated region
    $region30: #{tpu_custom_call.1} parent=1 // pred_check
      _
    $region31: #{tpu_custom_call.1} parent=1 // pred_check_branch
      %90 = sbr.rel (0) target = $region33
    $region32: #{tpu_custom_call.1} parent=1 // pred_region
      %s92 = ssub.s32 16, 16
      %93 = vsyncadd [#allocation3], %s92
      %s95 = sshll.u32 [#allocation2], 4
      %s96 = int_to_ptr.vmem [resolvable:$true] %s95
      %98 = dma.vmem_to_hbm [thread:$0]  %s96, 16, %s7, [#allocation3]
    $region33: #{tpu_custom_call.1} parent=1 // pred_fallthru
      _
    // Predicated region
    $region34: #{tpu_custom_call.1} parent=1 // pred_check
      _
    $region35: #{tpu_custom_call.1} parent=1 // pred_check_branch
      %100 = sbr.rel (0) target = $region37
    $region36: #{tpu_custom_call.1} parent=1 // pred_region
      %101 = dma.done [#allocation3], 16
    $region37: #{tpu_custom_call.1} parent=1 // pred_fallthru
      _
    %102 = vsyncpa [#allocation3], 1

</llo_original>
